<compile_context>
chip_gen: v5e
topology: v5e:2x2
jax: 0.10.0
libtpu: 0.0.40
codegen_flags: <defaults>
</compile_context>

<pallas_src>
import functools

import jax
import jax.numpy as jnp
from jax import lax
from jax.experimental import pallas as pl
from jax.experimental.pallas import tpu as pltpu

NUM_CLASSES = 4
ALPHA = 0.25
GAMMA = 2.0


def _round_up(x, m):
    return ((x + m - 1) // m) * m


def _chip_defaults():
    """Per-generation (num_shards, tile_n)."""
    kind = ""
    try:
        kind = str(getattr(jax.devices()[0], "device_kind", "")).lower()
    except Exception:
        kind = ""
    if "v5e" in kind or "v5 lite" in kind or "v5lite" in kind:
        return 1, 32768        # 16 MiB default scoped VMEM, ~0.82 TB/s HBM
    if "v6" in kind:           # v6e / Trillium: single TC, 32 MiB scoped VMEM
        return 1, 65536
    if "v7" in kind or "7x" in kind:   # v7x: 2 TensorCores, 64 MiB physical VMEM
        return 2, 65536
    if "v4" in kind or "v5p" in kind:  # other megacore chips: use both TCs
        return 2, 32768
    return 1, 32768            # conservative default


def _focal_ssd_kernel(slab_ref, tgt_ref, out_ref, *,
                      num_classes, alpha, gamma, n_total):
    # out_ref: (4, tile_n) f32 per-lane partial sums
    #   row 0: masked focal loss   row 1: valid count
    #   row 2: smooth-L1 (pos)     row 3: pos count
    # It stays resident across the inner ("arbitrary") reduction axis.
    @pl.when(pl.program_id(1) == 0)
    def _():
        out_ref[...] = jnp.zeros_like(out_ref)

    C = num_classes
    tile_n = tgt_ref.shape[-1]

    # ---- ragged-tail mask: global lane index >= n_total contributes nothing.
    block = pl.program_id(0) * pl.num_programs(1) + pl.program_id(1)
    col0 = block * tile_n
    lane_idx = col0 + lax.broadcasted_iota(jnp.int32, (1, tile_n), 1)
    in_bounds = lane_idx < n_total

    slab = slab_ref[...].astype(jnp.float32)              # (C+8, tn)
    conf = slab[0:C, :]                                    # (C, tn)
    loc_p = slab[C:C + 4, :]                               # (4, tn)
    loc_g = slab[C + 4:C + 8, :]                           # (4, tn)

    tgt = tgt_ref[...]                                     # (1, tn) int32
    valid = (tgt >= 0) & in_bounds                         # (1, tn)
    pos = (tgt > 0) & in_bounds                            # (1, tn)
    ids = jnp.where(valid, tgt, 0)                         # ignored/OOB -> 0

    # ---- fused log-softmax over classes (sublane axis); exponentials reused.
    m = jnp.max(conf, axis=0, keepdims=True)               # (1, tn)
    e = jnp.exp(conf - m)                                  # (C, tn)
    sum_e = jnp.sum(e, axis=0, keepdims=True)              # (1, tn)
    onehot = lax.broadcasted_iota(jnp.int32, conf.shape, 0) == ids
    x_t = jnp.sum(jnp.where(onehot, conf, jnp.float32(0.0)),
                  axis=0, keepdims=True)                   # target-class logit
    e_t = jnp.sum(jnp.where(onehot, e, jnp.float32(0.0)),
                  axis=0, keepdims=True)
    log_p = x_t - m - jnp.log(sum_e)                       # exact, finite, <= 0
    probs = e_t * pl.reciprocal(sum_e)                     # no second exp

    one_minus_p = 1.0 - probs
    if float(gamma) == int(gamma):
        focal_w = lax.integer_pow(one_minus_p, int(gamma))
    else:
        focal_w = jnp.power(one_minus_p, jnp.float32(gamma))

    alpha_w = jnp.where(pos, jnp.float32(alpha), jnp.float32(1.0 - alpha))
    batch_loss = -alpha_w * focal_w * log_p                # (1, tn)
    masked_loss = jnp.where(valid, batch_loss, jnp.float32(0.0))

    # ---- smooth-L1 localization loss over positive anchors (where, not *,
    # so undefined tail lanes can never leak NaN/Inf into the sum).
    diff = jnp.abs(loc_p - loc_g)                          # (4, tn)
    sl1 = jnp.where(diff < 1.0, 0.5 * diff * diff, diff - 0.5)
    loc_l = jnp.where(pos, jnp.sum(sl1, axis=0, keepdims=True),
                      jnp.float32(0.0))                    # (1, tn)

    valid_f = valid.astype(jnp.float32)
    pos_f = pos.astype(jnp.float32)

    # ---- row-sliced accumulation (no sublane concatenate of (1,tn) pieces).
    out_ref[0:1, :] = out_ref[0:1, :] + masked_loss
    out_ref[1:2, :] = out_ref[1:2, :] + valid_f
    out_ref[2:3, :] = out_ref[2:3, :] + loc_l
    out_ref[3:4, :] = out_ref[3:4, :] + pos_f


def focal_loss_forward(loc_data, conf_data, loc_t, conf_t, *,
                       alpha=ALPHA, gamma=GAMMA, tile_n=None, num_shards=None):
    """Mirrors FocalLoss.forward (softmax focal loss) given pre-matched targets.

    loc_data : (B, P, 4)  float   predicted offsets
    conf_data: (B, P, C)  float   class logits
    loc_t    : (B, P, 4)  float   matched gt offsets
    conf_t   : (B, P)     int     matched labels (<0 ignore, 0 bg, >0 class)
    Returns (loss_l, loss_c) scalars.
    """
    B, P, C = conf_data.shape
    N = B * P

    d_shards, d_tile = _chip_defaults()
    if num_shards is None:
        num_shards = d_shards
    if tile_n is None:
        tile_n = d_tile

    # ---- single fused packing pass: (C+8, N) slab (native dtype) + i32 ids --
    slab_dtype = jnp.promote_types(conf_data.dtype, loc_data.dtype)
    if (not jnp.issubdtype(slab_dtype, jnp.floating)
            or slab_dtype == jnp.dtype(jnp.float64)):
        slab_dtype = jnp.dtype(jnp.float32)
    slab = jnp.concatenate(
        [conf_data.reshape(N, C).T.astype(slab_dtype),
         loc_data.reshape(N, 4).T.astype(slab_dtype),
         loc_t.reshape(N, 4).T.astype(slab_dtype)], axis=0)          # (C+8, N)
    tgt = conf_t.reshape(1, N).astype(jnp.int32)                     # (1, N)

    # ---- chip-sized lane tiles; ragged tail handled in-kernel (no jnp.pad) --
    tile_n = _round_up(max(128, min(int(tile_n), _round_up(N, 128))), 128)
    n_blocks = pl.cdiv(N, tile_n)
    num_shards = max(1, min(int(num_shards), n_blocks))
    steps = pl.cdiv(n_blocks, num_shards)

    def lane_block(s, i):
        # Clamp so a trailing no-op step never maps a fully out-of-bounds
        # block; its lanes are zero-masked in-kernel anyway.
        return jnp.minimum(s * steps + i, n_blocks - 1)

    esize = jnp.dtype(slab_dtype).itemsize
    vmem_need = (2 * _round_up(C + 8, 8) * tile_n * esize   # packed slab, 2 bufs
                 + 2 * 8 * tile_n * 4                       # (1,tn) i32 targets
                 + 2 * 8 * tile_n * 4)                      # resident out block
    vmem_limit = int(max(32 << 20, min(vmem_need + (8 << 20), 48 << 20)))

    kernel = functools.partial(_focal_ssd_kernel, num_classes=C,
                               alpha=alpha, gamma=gamma, n_total=N)

    partials = pl.pallas_call(
        kernel,
        out_shape=jax.ShapeDtypeStruct((num_shards, 4, tile_n), jnp.float32),
        grid=(num_shards, steps),
        in_specs=[
            pl.BlockSpec((C + 8, tile_n), lambda s, i: (0, lane_block(s, i))),
            pl.BlockSpec((1, tile_n), lambda s, i: (0, lane_block(s, i))),
        ],
        out_specs=pl.BlockSpec((None, 4, tile_n), lambda s, i: (s, 0, 0)),
        compiler_params=pltpu.CompilerParams(
            dimension_semantics=("parallel", "arbitrary"),
            vmem_limit_bytes=vmem_limit),
    )(slab, tgt)

    totals = jnp.sum(partials, axis=(0, 2))                           # (4,)
    loss_c_sum, valid_cnt = totals[0], totals[1]
    loss_l_sum, pos_cnt = totals[2], totals[3]

    # loss_c = 2 * sum(valid focal losses) * (N / (num_valid * batch)).
    # Note: valid_cnt is clamped to 1 to avoid inf when no anchor is valid
    # (the PyTorch reference would NaN there); num_pos is clamped like PyTorch.
    loss_c = 2.0 * loss_c_sum * (jnp.float32(N) /
                                 (jnp.maximum(valid_cnt, 1.0) * jnp.float32(B)))
    loss_l = loss_l_sum / jnp.maximum(pos_cnt, 1.0)
    return loss_l, loss_c


def _reference(loc_data, conf_data, loc_t, conf_t, alpha=ALPHA, gamma=GAMMA):
    B, P, C = conf_data.shape
    N = B * P
    conf2 = conf_data.reshape(N, C).astype(jnp.float32)
    ids = conf_t.reshape(N).astype(jnp.int32)
    valid = ids >= 0
    pos = ids > 0
    ids_c = jnp.where(valid, ids, 0)
    probs = jnp.take_along_axis(jax.nn.softmax(conf2, axis=1),
                                ids_c[:, None], axis=1)[:, 0]
    aw = jnp.where(pos, alpha, 1.0 - alpha)
    bl = -aw * (1.0 - probs) ** gamma * jnp.log(probs)
    num_valid = jnp.sum(valid.astype(jnp.float32))
    loss_c = 2.0 * jnp.sum(jnp.where(valid, bl, 0.0)) * (N / (num_valid * B))
    diff = jnp.abs(loc_data.reshape(N, 4) - loc_t.reshape(N, 4))
    sl1 = jnp.where(diff < 1.0, 0.5 * diff * diff, diff - 0.5)
    num_pos = jnp.maximum(jnp.sum(pos.astype(jnp.float32)), 1.0)
    loss_l = jnp.sum(sl1 * pos[:, None].astype(jnp.float32)) / num_pos
    return loss_l, loss_c


if __name__ == "__main__":
    key = jax.random.PRNGKey(0)
    k1, k2, k3, k4 = jax.random.split(key, 4)

    # Small, ragged anchor count to exercise the in-kernel tail-masking path.
    B, P, C = 2, 100, NUM_CLASSES
    conf_data = jax.random.normal(k1, (B, P, C), dtype=jnp.float32)
    loc_data = jax.random.normal(k2, (B, P, 4), dtype=jnp.float32)
    loc_t = jax.random.normal(k3, (B, P, 4), dtype=jnp.float32)
    # matched labels: -1 ignore, 0 background, 1..C-1 foreground
    conf_t = jax.random.randint(k4, (B, P), -1, C, dtype=jnp.int32)

    loss_l, loss_c = focal_loss_forward(loc_data, conf_data, loc_t, conf_t)
    loss_l, loss_c = jax.block_until_ready((loss_l, loss_c))

    ref_l, ref_c = _reference(loc_data, conf_data, loc_t, conf_t)
    assert jnp.allclose(loss_l, ref_l, rtol=1e-5, atol=1e-5), (loss_l, ref_l)
    assert jnp.allclose(loss_c, ref_c, rtol=1e-5, atol=1e-5), (loss_c, ref_c)
    assert not jnp.isnan(loss_c)

    print("KERNEL_OK")
</pallas_src>

<mosaic_0001>
module attributes {stable_mosaic.version = 11 : i64} {
  func.func @_focal_ssd_kernel(%arg0: i32, %arg1: i32, %arg2: memref<12x256xf32, #tpu.memory_space<vmem>>, %arg3: memref<1x256xi32, #tpu.memory_space<vmem>>, %arg4: memref<1x4x256xf32, #tpu.memory_space<vmem>>) attributes {dimension_semantics = [#tpu.dimension_semantics<parallel>, #tpu.dimension_semantics<arbitrary>], iteration_bounds = array<i64: 1, 1>, scalar_prefetch = 0 : i64, scratch_operands = 0 : i64, tpu.core_type = #tpu.core_type<tc>, window_params = [{transform_indices = @transform_0, window_bounds = array<i64: 12, 256>}, {transform_indices = @transform_1, window_bounds = array<i64: 1, 256>}, {transform_indices = @transform_2, window_bounds = array<i64: 1, 4, 256>}]} {
    %c0_i32 = arith.constant 0 : i32
    %0 = arith.cmpi eq, %arg1, %c0_i32 : i32
    %1 = arith.extui %0 : i1 to i32
    %c0_i32_0 = arith.constant 0 : i32
    %2 = arith.cmpi ne, %1, %c0_i32_0 : i32
    scf.if %2 {
      %cst_43 = arith.constant 0.000000e+00 : f32
      %101 = vector.broadcast %cst_43 : f32 to vector<4x256xf32>
      %c0_44 = arith.constant 0 : index
      %c0_45 = arith.constant 0 : index
      %c0_46 = arith.constant 0 : index
      %102 = vector.load %arg4[%c0_44, %c0_45, %c0_46] : memref<1x4x256xf32, #tpu.memory_space<vmem>>, vector<1x4x256xf32>
      %103 = vector.shape_cast %102 : vector<1x4x256xf32> to vector<4x256xf32>
      %104 = vector.shape_cast %101 : vector<4x256xf32> to vector<1x4x256xf32>
      tpu.vector_store %arg4[%c0_44, %c0_45, %c0_46], %104 {strides = array<i32>} : memref<1x4x256xf32, #tpu.memory_space<vmem>>, vector<1x4x256xf32>,
    } else {
    }
    %c1_i32 = arith.constant 1 : i32
    %3 = arith.muli %arg0, %c1_i32 : i32
    %4 = arith.addi %3, %arg1 : i32
    %c256_i32 = arith.constant 256 : i32
    %5 = arith.muli %4, %c256_i32 : i32
    %6 = tpu.iota {dimensions = array<i32: 1>} : vector<1x256xi32>
    %7 = vector.broadcast %5 : i32 to vector<1x256xi32>
    %8 = arith.addi %7, %6 : vector<1x256xi32>
    %c200_i32 = arith.constant 200 : i32
    %9 = vector.broadcast %c200_i32 : i32 to vector<1x256xi32>
    %10 = arith.cmpi slt, %8, %9 : vector<1x256xi32>
    %c0 = arith.constant 0 : index
    %c0_1 = arith.constant 0 : index
    %11 = vector.load %arg2[%c0, %c0_1] : memref<12x256xf32, #tpu.memory_space<vmem>>, vector<12x256xf32>
    %12 = vector.extract_strided_slice %11 {offsets = [0, 0], sizes = [4, 256], strides = [1, 1]} : vector<12x256xf32> to vector<4x256xf32>
    %13 = vector.extract_strided_slice %11 {offsets = [4, 0], sizes = [4, 256], strides = [1, 1]} : vector<12x256xf32> to vector<4x256xf32>
    %14 = vector.extract_strided_slice %11 {offsets = [8, 0], sizes = [4, 256], strides = [1, 1]} : vector<12x256xf32> to vector<4x256xf32>
    %c0_2 = arith.constant 0 : index
    %c0_3 = arith.constant 0 : index
    %15 = vector.load %arg3[%c0_2, %c0_3] : memref<1x256xi32, #tpu.memory_space<vmem>>, vector<1x256xi32>
    %c0_i32_4 = arith.constant 0 : i32
    %16 = vector.broadcast %c0_i32_4 : i32 to vector<1x256xi32>
    %17 = arith.cmpi sge, %15, %16 : vector<1x256xi32>
    %18 = arith.andi %17, %10 : vector<1x256xi1>
    %c0_i32_5 = arith.constant 0 : i32
    %19 = vector.broadcast %c0_i32_5 : i32 to vector<1x256xi32>
    %20 = arith.cmpi sgt, %15, %19 : vector<1x256xi32>
    %21 = arith.andi %20, %10 : vector<1x256xi1>
    %c0_i32_6 = arith.constant 0 : i32
    %22 = vector.broadcast %c0_i32_6 : i32 to vector<1x256xi32>
    %23 = arith.select %18, %15, %22 : vector<1x256xi1>, vector<1x256xi32>
    %cst = arith.constant dense<0xFF800000> : vector<256xf32>
    %24 = vector.multi_reduction <maximumf>, %12, %cst [0] : vector<4x256xf32> to vector<256xf32>
    %25 = vector.shape_cast %24 : vector<256xf32> to vector<1x256xf32>
    %26 = vector.broadcast %25 : vector<1x256xf32> to vector<4x256xf32>
    %27 = arith.subf %12, %26 : vector<4x256xf32>
    %28 = math.exp %27 : vector<4x256xf32>
    %cst_7 = arith.constant dense<0.000000e+00> : vector<256xf32>
    %29 = vector.multi_reduction <add>, %28, %cst_7 [0] : vector<4x256xf32> to vector<256xf32>
    %30 = vector.shape_cast %29 : vector<256xf32> to vector<1x256xf32>
    %31 = tpu.iota {dimensions = array<i32: 0>} : vector<4x256xi32>
    %32 = vector.broadcast %23 : vector<1x256xi32> to vector<4x256xi32>
    %33 = arith.cmpi eq, %31, %32 : vector<4x256xi32>
    %cst_8 = arith.constant 0.000000e+00 : f32
    %34 = vector.broadcast %cst_8 : f32 to vector<4x256xf32>
    %35 = arith.select %33, %12, %34 : vector<4x256xi1>, vector<4x256xf32>
    %cst_9 = arith.constant dense<0.000000e+00> : vector<256xf32>
    %36 = vector.multi_reduction <add>, %35, %cst_9 [0] : vector<4x256xf32> to vector<256xf32>
    %37 = vector.shape_cast %36 : vector<256xf32> to vector<1x256xf32>
    %cst_10 = arith.constant 0.000000e+00 : f32
    %38 = vector.broadcast %cst_10 : f32 to vector<4x256xf32>
    %39 = arith.select %33, %28, %38 : vector<4x256xi1>, vector<4x256xf32>
    %cst_11 = arith.constant dense<0.000000e+00> : vector<256xf32>
    %40 = vector.multi_reduction <add>, %39, %cst_11 [0] : vector<4x256xf32> to vector<256xf32>
    %41 = vector.shape_cast %40 : vector<256xf32> to vector<1x256xf32>
    %42 = arith.subf %37, %25 : vector<1x256xf32>
    %43 = math.log %30 : vector<1x256xf32>
    %44 = arith.subf %42, %43 : vector<1x256xf32>
    %45 = tpu.reciprocal %30 : vector<1x256xf32> -> vector<1x256xf32>
    %46 = arith.mulf %41, %45 : vector<1x256xf32>
    %cst_12 = arith.constant 1.000000e+00 : f32
    %47 = vector.broadcast %cst_12 : f32 to vector<1x256xf32>
    %48 = arith.subf %47, %46 : vector<1x256xf32>
    %49 = arith.mulf %48, %48 : vector<1x256xf32>
    %cst_13 = arith.constant 2.500000e-01 : f32
    %cst_14 = arith.constant 7.500000e-01 : f32
    %50 = vector.broadcast %cst_13 : f32 to vector<1x256xf32>
    %51 = vector.broadcast %cst_14 : f32 to vector<1x256xf32>
    %52 = arith.select %21, %50, %51 : vector<1x256xi1>, vector<1x256xf32>
    %cst_15 = arith.constant 0.000000e+00 : f32
    %53 = vector.broadcast %cst_15 : f32 to vector<1x256xf32>
    %54 = arith.subf %53, %52 : vector<1x256xf32>
    %55 = arith.mulf %54, %49 : vector<1x256xf32>
    %56 = arith.mulf %55, %44 : vector<1x256xf32>
    %cst_16 = arith.constant 0.000000e+00 : f32
    %57 = vector.broadcast %cst_16 : f32 to vector<1x256xf32>
    %58 = arith.select %18, %56, %57 : vector<1x256xi1>, vector<1x256xf32>
    %59 = arith.subf %13, %14 : vector<4x256xf32>
    %60 = math.absf %59 : vector<4x256xf32>
    %cst_17 = arith.constant 1.000000e+00 : f32
    %61 = vector.broadcast %cst_17 : f32 to vector<4x256xf32>
    %62 = arith.cmpf olt, %60, %61 : vector<4x256xf32>
    %cst_18 = arith.constant 5.000000e-01 : f32
    %63 = vector.broadcast %cst_18 : f32 to vector<4x256xf32>
    %64 = arith.mulf %63, %60 : vector<4x256xf32>
    %65 = arith.mulf %64, %60 : vector<4x256xf32>
    %cst_19 = arith.constant 5.000000e-01 : f32
    %66 = vector.broadcast %cst_19 : f32 to vector<4x256xf32>
    %67 = arith.subf %60, %66 : vector<4x256xf32>
    %68 = arith.select %62, %65, %67 : vector<4x256xi1>, vector<4x256xf32>
    %cst_20 = arith.constant dense<0.000000e+00> : vector<256xf32>
    %69 = vector.multi_reduction <add>, %68, %cst_20 [0] : vector<4x256xf32> to vector<256xf32>
    %70 = vector.shape_cast %69 : vector<256xf32> to vector<1x256xf32>
    %cst_21 = arith.constant 0.000000e+00 : f32
    %71 = vector.broadcast %cst_21 : f32 to vector<1x256xf32>
    %72 = arith.select %21, %70, %71 : vector<1x256xi1>, vector<1x256xf32>
    %73 = arith.extui %18 : vector<1x256xi1> to vector<1x256xi32>
    %74 = arith.sitofp %73 : vector<1x256xi32> to vector<1x256xf32>
    %75 = arith.extui %21 : vector<1x256xi1> to vector<1x256xi32>
    %76 = arith.sitofp %75 : vector<1x256xi32> to vector<1x256xf32>
    %c0_22 = arith.constant 0 : index
    %c0_23 = arith.constant 0 : index
    %c0_24 = arith.constant 0 : index
    %77 = vector.load %arg4[%c0_22, %c0_23, %c0_24] : memref<1x4x256xf32, #tpu.memory_space<vmem>>, vector<1x1x256xf32>
    %78 = vector.shape_cast %77 : vector<1x1x256xf32> to vector<1x256xf32>
    %79 = arith.addf %78, %58 : vector<1x256xf32>
    %c0_25 = arith.constant 0 : index
    %c0_26 = arith.constant 0 : index
    %c0_27 = arith.constant 0 : index
    %80 = vector.load %arg4[%c0_25, %c0_26, %c0_27] : memref<1x4x256xf32, #tpu.memory_space<vmem>>, vector<1x1x256xf32>
    %81 = vector.shape_cast %80 : vector<1x1x256xf32> to vector<1x256xf32>
    %82 = vector.shape_cast %79 : vector<1x256xf32> to vector<1x1x256xf32>
    tpu.vector_store %arg4[%c0_25, %c0_26, %c0_27], %82 {strides = array<i32>} : memref<1x4x256xf32, #tpu.memory_space<vmem>>, vector<1x1x256xf32>,
    %c0_28 = arith.constant 0 : index
    %c1 = arith.constant 1 : index
    %c0_29 = arith.constant 0 : index
    %83 = vector.load %arg4[%c0_28, %c1, %c0_29] : memref<1x4x256xf32, #tpu.memory_space<vmem>>, vector<1x1x256xf32>
    %84 = vector.shape_cast %83 : vector<1x1x256xf32> to vector<1x256xf32>
    %85 = arith.addf %84, %74 : vector<1x256xf32>
    %c0_30 = arith.constant 0 : index
    %c1_31 = arith.constant 1 : index
    %c0_32 = arith.constant 0 : index
    %86 = vector.load %arg4[%c0_30, %c1_31, %c0_32] : memref<1x4x256xf32, #tpu.memory_space<vmem>>, vector<1x1x256xf32>
    %87 = vector.shape_cast %86 : vector<1x1x256xf32> to vector<1x256xf32>
    %88 = vector.shape_cast %85 : vector<1x256xf32> to vector<1x1x256xf32>
    tpu.vector_store %arg4[%c0_30, %c1_31, %c0_32], %88 {strides = array<i32>} : memref<1x4x256xf32, #tpu.memory_space<vmem>>, vector<1x1x256xf32>,
    %c0_33 = arith.constant 0 : index
    %c2 = arith.constant 2 : index
    %c0_34 = arith.constant 0 : index
    %89 = vector.load %arg4[%c0_33, %c2, %c0_34] : memref<1x4x256xf32, #tpu.memory_space<vmem>>, vector<1x1x256xf32>
    %90 = vector.shape_cast %89 : vector<1x1x256xf32> to vector<1x256xf32>
    %91 = arith.addf %90, %72 : vector<1x256xf32>
    %c0_35 = arith.constant 0 : index
    %c2_36 = arith.constant 2 : index
    %c0_37 = arith.constant 0 : index
    %92 = vector.load %arg4[%c0_35, %c2_36, %c0_37] : memref<1x4x256xf32, #tpu.memory_space<vmem>>, vector<1x1x256xf32>
    %93 = vector.shape_cast %92 : vector<1x1x256xf32> to vector<1x256xf32>
    %94 = vector.shape_cast %91 : vector<1x256xf32> to vector<1x1x256xf32>
    tpu.vector_store %arg4[%c0_35, %c2_36, %c0_37], %94 {strides = array<i32>} : memref<1x4x256xf32, #tpu.memory_space<vmem>>, vector<1x1x256xf32>,
    %c0_38 = arith.constant 0 : index
    %c3 = arith.constant 3 : index
    %c0_39 = arith.constant 0 : index
    %95 = vector.load %arg4[%c0_38, %c3, %c0_39] : memref<1x4x256xf32, #tpu.memory_space<vmem>>, vector<1x1x256xf32>
    %96 = vector.shape_cast %95 : vector<1x1x256xf32> to vector<1x256xf32>
    %97 = arith.addf %96, %76 : vector<1x256xf32>
    %c0_40 = arith.constant 0 : index
    %c3_41 = arith.constant 3 : index
    %c0_42 = arith.constant 0 : index
    %98 = vector.load %arg4[%c0_40, %c3_41, %c0_42] : memref<1x4x256xf32, #tpu.memory_space<vmem>>, vector<1x1x256xf32>
    %99 = vector.shape_cast %98 : vector<1x1x256xf32> to vector<1x256xf32>
    %100 = vector.shape_cast %97 : vector<1x256xf32> to vector<1x1x256xf32>
    tpu.vector_store %arg4[%c0_40, %c3_41, %c0_42], %100 {strides = array<i32>} : memref<1x4x256xf32, #tpu.memory_space<vmem>>, vector<1x1x256xf32>,
    return
  }
  func.func @transform_0(%arg0: i32, %arg1: i32) -> (i32, i32) {
    %c1_i32 = arith.constant 1 : i32
    %0 = arith.muli %arg0, %c1_i32 : i32
    %1 = arith.addi %0, %arg1 : i32
    %c0_i32 = arith.constant 0 : i32
    %2 = arith.minsi %1, %c0_i32 : i32
    %c0_i32_0 = arith.constant 0 : i32
    %c0_i32_1 = arith.constant 0 : i32
    return %c0_i32_0, %2 : i32, i32
  }
  func.func @transform_1(%arg0: i32, %arg1: i32) -> (i32, i32) {
    %c1_i32 = arith.constant 1 : i32
    %0 = arith.muli %arg0, %c1_i32 : i32
    %1 = arith.addi %0, %arg1 : i32
    %c0_i32 = arith.constant 0 : i32
    %2 = arith.minsi %1, %c0_i32 : i32
    %c0_i32_0 = arith.constant 0 : i32
    %c0_i32_1 = arith.constant 0 : i32
    return %c0_i32_0, %2 : i32, i32
  }
  func.func @transform_2(%arg0: i32, %arg1: i32) -> (i32, i32, i32) {
    %c0_i32 = arith.constant 0 : i32
    %c0_i32_0 = arith.constant 0 : i32
    %c0_i32_1 = arith.constant 0 : i32
    return %arg0, %c0_i32, %c0_i32_0 : i32, i32, i32
  }
}

</mosaic_0001>

<llo_original>
// kernel: tpu_custom_call.1
$region0: #{tpu_custom_call.1}
  #allocation0 [shape = 'u32[]', space=smem, size = 0x4, offset = 0x4, fixed_abs, tag = 'smem constant byte address 0x4 - core index']
  #allocation1 [shape = 'u32[72,128]{1,0:T(1,128)}', space=vmem, size = 0x9000, scoped, tag = 'internal scratch']
  %s0 = inlined_call_operand.hbm [shape: f32[12,200], index: 0, kind: input, shape index: {}]
  %s1 = inlined_call_operand.hbm [shape: s32[1,200], index: 1, kind: input, shape index: {}]
  %s2 = inlined_call_operand.hbm [shape: f32[1,4,256], index: 2, kind: output, shape index: {}]
  %s3 = sld [smem:[#allocation0]]
  $region30: #{tpu_custom_call.1} parent=0
    _
  %s5 = ssub.s32 1, %s3
  %s6 = scalar_select 0, %s5, %s3
  $region1: #{tpu_custom_call.1} parent=0
    #allocation2 [shape = 'u8[16384]{0}', space=vmem, size = 0x4000, scoped, tag = 'input window, operand 0, single buffered']
    #allocation3 [shape = 's32[1]{0}', space=sflag, size = 0x4, scoped, tag = 'scoped memory for tpu_custom_call.1']
    #allocation4 [shape = 's32[1]{0}', space=sflag, size = 0x4, scoped, tag = 'scoped memory for tpu_custom_call.1']
    #allocation5 [shape = 'u8[1024]{0}', space=vmem, size = 0x400, scoped, tag = 'input window, operand 1, single buffered']
    #allocation6 [shape = 's32[1]{0}', space=sflag, size = 0x4, scoped, tag = 'scoped memory for tpu_custom_call.1']
    #allocation7 [shape = 'u8[4096]{0}', space=vmem, size = 0x1000, scoped, tag = 'output window, operand 0, single buffered']
    %7 = vsyncpa [#allocation3], 0
    %8 = vsyncpa [#allocation6], 0
    %9 = vsyncpa [#allocation4], 0
    // Predicated region
    $region2: #{tpu_custom_call.1} parent=1 // pred_check
      _
    $region3: #{tpu_custom_call.1} parent=1 // pred_check_branch
      %11 = sbr.rel (0) target = $region5
    $region4: #{tpu_custom_call.1} parent=1 // pred_region
      %s12 = sadd.s32 0, 0
      %p13 = scmp.lt.s32.totalorder %s12, 0
      %s14 = scalar_select %p13, %s12, 0
      %s15 = smul.u32 2, %s14
      %17 = vsyncadd [#allocation3], 0
      %s18 = smul.addr %s15, 8
      %s19 = scalar_lea.hbm %s0, %s18
      %s20 = sshll.u32 %s19, 4
      %s21 = int_to_ptr.hbm [resolvable:$true] %s20
      %s22 = sshll.u32 [#allocation2], 4
      %s23 = int_to_ptr.vmem [resolvable:$true] %s22
      %28 = dma.hbm_to_vmem [thread:$0]  %s21, 512, %s23, [#allocation3], 256, 256, 16
    $region5: #{tpu_custom_call.1} parent=1 // pred_fallthru
      _
    // Predicated region
    $region6: #{tpu_custom_call.1} parent=1 // pred_check
      _
    $region7: #{tpu_custom_call.1} parent=1 // pred_check_branch
      %30 = sbr.rel (0) target = $region9
    $region8: #{tpu_custom_call.1} parent=1 // pred_region
      %s31 = sadd.s32 0, 0
      %p32 = scmp.lt.s32.totalorder %s31, 0
      %s33 = scalar_select %p32, %s31, 0
      %s34 = smul.u32 2, %s33
      %36 = vsyncadd [#allocation6], 0
      %s37 = scalar_lea.hbm %s1, %s34
      %s39 = sshll.u32 %s37, 4
      %s40 = int_to_ptr.hbm [resolvable:$true] %s39
      %s41 = sshll.u32 [#allocation5], 4
      %s42 = int_to_ptr.vmem [resolvable:$true] %s41
      %44 = dma.hbm_to_vmem [thread:$0]  %s40, 32, %s42, [#allocation6]
    $region9: #{tpu_custom_call.1} parent=1 // pred_fallthru
      _
    // Predicated region
    $region10: #{tpu_custom_call.1} parent=1 // pred_check
      _
    $region11: #{tpu_custom_call.1} parent=1 // pred_check_branch
      %46 = sbr.rel (0) target = $region13
    $region12: #{tpu_custom_call.1} parent=1 // pred_region
      %48 = dma.done [#allocation3], 512
    $region13: #{tpu_custom_call.1} parent=1 // pred_fallthru
      _
    // Predicated region
    $region14: #{tpu_custom_call.1} parent=1 // pred_check
      _
    $region15: #{tpu_custom_call.1} parent=1 // pred_check_branch
      %50 = sbr.rel (0) target = $region17
    $region16: #{tpu_custom_call.1} parent=1 // pred_region
      %52 = dma.done [#allocation6], 32
    $region17: #{tpu_custom_call.1} parent=1 // pred_fallthru
      _
    %s53 = sadd.s32 0, 0
    %p54 = scmp.lt.s32.totalorder %s53, 0
    %s55 = scalar_select %p54, %s53, 0
    %s56 = smul.u32 2, %s55
    %s57 = sadd.s32 0, 0
    %p58 = scmp.lt.s32.totalorder %s57, 0
    %s59 = scalar_select %p58, %s57, 0
    %s60 = smul.u32 2, %s59
    %p61 = scmp.eq.s32.totalorder 0, 0
    // Predicated region
    $region18: #{tpu_custom_call.1} parent=1 // pred_check
      %p62 = pneg %p61
    $region19: #{tpu_custom_call.1} parent=1 // pred_check_branch
      %64 = sbr.rel (%p62) target = $region21
    $region20: #{tpu_custom_call.1} parent=1 // pred_region
      %65 = vst [vmem:[#allocation7] sm:$0xff] 0.0
    $region21: #{tpu_custom_call.1} parent=1 // pred_fallthru
      _
    %s66 = sadd.s32 0, 0
    %s67 = smul.u32 %s66, 256
    %v68 = vlaneseq
    %v69 = vand.u32 %v68, 127
    %v70 = vadd.s32 %v69, 128
    %v71 = vstv %s67
    %v72 = vadd.s32 %v71, %v69
    %v73 = vadd.s32 %v71, %v70
    %vm74 = vcmp.lt.s32.totalorder %v72, 200
    %vm75 = vcmp.lt.s32.totalorder %v73, 200
    %v76 = vld [vmem:[#allocation2] sm:$0xff]
    %v77 = vld [vmem:[#allocation2 + $0x8] sm:$0xff]
    %v78 = vld [vmem:[#allocation2 + $0x10] sm:$0xf]
    %v79 = vld [vmem:[#allocation2 + $0x18] sm:$0xf]
    %v80 = vld [vmem:[#allocation5] sm:$0x3]
    %vm81 = vcmp.ge.s32.totalorder %v80, 0
    %v82 = vsel %vm74, 1, 0
    %v83 = vsel %vm75, 1, 0
    %v84 = vrot.slane %v83, 7
    %vm85 = vcmask 1040384
    %v86 = vsel %vm85, %v82, %v84
    %vm87 = vcmp.ne.s32.totalorder %v86, 0
    %vm88 = vmand %vm81, %vm87
    %vm89 = vcmp.gt.s32.totalorder %v80, 0
    %vm90 = vmand %vm89, %vm87
    %v91 = vsel %vm88, %v80, 0
    %vm92 = vcmask 1043456
    %v93 = vsel %vm92, %v76, -inf
    %v94 = vrot.slane %v93, 4
    %v95 = vmax.f32 %v93, %v94
    %v96 = vrot.slane %v95, 2
    %v97 = vmax.f32 %v95, %v96
    %v98 = vrot.slane %v97, 1
    %v99 = vmax.f32 %v97, %v98
    %v100 = vsel %vm92, %v77, -inf
    %v101 = vrot.slane %v100, 4
    %v102 = vmax.f32 %v100, %v101
    %v103 = vrot.slane %v102, 2
    %v104 = vmax.f32 %v102, %v103
    %v105 = vrot.slane %v104, 1
    %v106 = vmax.f32 %v104, %v105
    %v107 = vsub.f32 %v76, %v99
    %v108 = vsub.f32 %v77, %v106
    %v109 = vmul.f32 %v107, 1.442695
    %v110 = vpow.pop %v109
    %v111 = vmul.f32 %v108, 1.442695
    %v112 = vpow.pop %v111
    %v113 = vsel %vm92, %v110, 0.0
    %v114 = vrot.slane %v113, 4
    %v115 = vadd.f32 %v113, %v114
    %v116 = vrot.slane %v115, 2
    %v117 = vadd.f32 %v115, %v116
    %v118 = vrot.slane %v117, 1
    %v119 = vadd.f32 %v117, %v118
    %v120 = vsel %vm92, %v112, 0.0
    %v121 = vrot.slane %v120, 4
    %v122 = vadd.f32 %v120, %v121
    %v123 = vrot.slane %v122, 2
    %v124 = vadd.f32 %v122, %v123
    %v125 = vrot.slane %v124, 1
    %v126 = vadd.f32 %v124, %v125
    %v127 = vlaneseq
    %v128 = vshrl.u32 %v127, 7
    %v129 = vperm.slane %v91, 0
    %v130 = vperm.slane %v91, 1
    %vm131 = vcmp.eq.s32.totalorder %v128, %v129
    %vm132 = vcmp.eq.s32.totalorder %v128, %v130
    %v133 = vsel %vm131, %v76, 0.0
    %v134 = vsel %vm132, %v77, 0.0
    %v135 = vsel %vm92, %v133, 0.0
    %v136 = vrot.slane %v135, 4
    %v137 = vadd.f32 %v135, %v136
    %v138 = vrot.slane %v137, 2
    %v139 = vadd.f32 %v137, %v138
    %v140 = vrot.slane %v139, 1
    %v141 = vadd.f32 %v139, %v140
    %v142 = vsel %vm92, %v134, 0.0
    %v143 = vrot.slane %v142, 4
    %v144 = vadd.f32 %v142, %v143
    %v145 = vrot.slane %v144, 2
    %v146 = vadd.f32 %v144, %v145
    %v147 = vrot.slane %v146, 1
    %v148 = vadd.f32 %v146, %v147
    %v149 = vsel %vm131, %v110, 0.0
    %v150 = vsel %vm132, %v112, 0.0
    %v151 = vsel %vm92, %v149, 0.0
    %v152 = vrot.slane %v151, 4
    %v153 = vadd.f32 %v151, %v152
    %v154 = vrot.slane %v153, 2
    %v155 = vadd.f32 %v153, %v154
    %v156 = vrot.slane %v155, 1
    %v157 = vadd.f32 %v155, %v156
    %v158 = vsel %vm92, %v150, 0.0
    %v159 = vrot.slane %v158, 4
    %v160 = vadd.f32 %v158, %v159
    %v161 = vrot.slane %v160, 2
    %v162 = vadd.f32 %v160, %v161
    %v163 = vrot.slane %v162, 1
    %v164 = vadd.f32 %v162, %v163
    %v165 = vsub.f32 %v141, %v99
    %v166 = vsub.f32 %v148, %v106
    %v167 = vlog2.pop %v119
    %v168 = vmul.f32 %v167, 0.6931472
    %v169 = vlog2.pop %v126
    %v170 = vmul.f32 %v169, 0.6931472
    %v171 = vsub.f32 %v165, %v168
    %v172 = vsub.f32 %v166, %v170
    %v173 = vrcp.pop %v119
    %v174 = vmul.f32 %v119, %v173
    %v175 = vsub.f32 1.0, %v174
    %v176 = vmul.f32 %v173, %v175
    %v177 = vadd.f32 %v173, %v176
    %vm178 = vweird.f32 %v119
    %vm179 = vweird.f32 %v173
    %vm180 = vmor %vm178, %vm179
    %v181 = vsel %vm180, %v173, %v177
    %v182 = vand.u32 2147483647, %v119
    %vm183 = vcmp.eq.f32.partialorder %v182, 8.507059e+37
    %v184 = vand.u32 %v119, 2147483648
    %v185 = vor.u32 1.1754944e-38, %v184
    %v186 = vsel %vm183, %v185, %v181
    %v187 = vrcp.pop %v126
    %v188 = vmul.f32 %v126, %v187
    %v189 = vsub.f32 1.0, %v188
    %v190 = vmul.f32 %v187, %v189
    %v191 = vadd.f32 %v187, %v190
    %vm192 = vweird.f32 %v126
    %vm193 = vweird.f32 %v187
    %vm194 = vmor %vm192, %vm193
    %v195 = vsel %vm194, %v187, %v191
    %v196 = vand.u32 2147483647, %v126
    %vm197 = vcmp.eq.f32.partialorder %v196, 8.507059e+37
    %v198 = vand.u32 %v126, 2147483648
    %v199 = vor.u32 1.1754944e-38, %v198
    %v200 = vsel %vm197, %v199, %v195
    %v201 = vmul.f32 %v157, %v186
    %v202 = vmul.f32 %v164, %v200
    %v203 = vsub.f32 1.0, %v201
    %v204 = vsub.f32 1.0, %v202
    %v205 = vmul.f32 %v203, %v203
    %v206 = vmul.f32 %v204, %v204
    %v207 = vsel %vm90, 0.25, 0.75
    %v208 = vsub.f32 0.0, %v207
    %v211 = vrot.slane %v206, 7
    %v212 = vsel %vm85, %v205, %v211
    %v214 = vmul.f32 %v208, %v212
    %v217 = vrot.slane %v172, 7
    %v218 = vsel %vm85, %v171, %v217
    %v220 = vmul.f32 %v214, %v218
    %v221 = vsel %vm88, %v220, 0.0
    %v224 = vrot.slane %v78, 4
    %v225 = vrot.slane %v79, 4
    %v228 = vsub.f32 %v76, %v224
    %v229 = vsub.f32 %v77, %v225
    %v230 = vand.u32 2147483647, %v228
    %v231 = vand.u32 2147483647, %v229
    %vm232 = vcmp.lt.f32.partialorder %v230, 1.0
    %vm233 = vcmp.lt.f32.partialorder %v231, 1.0
    %v234 = vmul.f32 %v230, 0.5
    %v235 = vmul.f32 %v231, 0.5
    %v236 = vmul.f32 %v234, %v230
    %v237 = vmul.f32 %v235, %v231
    %v238 = vsub.f32 %v230, 0.5
    %v239 = vsub.f32 %v231, 0.5
    %v240 = vsel %vm232, %v236, %v238
    %v241 = vsel %vm233, %v237, %v239
    %v244 = vrot.slane %v240, 4
    %v245 = vrot.slane %v241, 4
    %v248 = vsel %vm92, %v244, 0.0
    %v249 = vrot.slane %v248, 4
    %v250 = vadd.f32 %v248, %v249
    %v251 = vrot.slane %v250, 2
    %v252 = vadd.f32 %v250, %v251
    %v253 = vrot.slane %v252, 1
    %v254 = vadd.f32 %v252, %v253
    %v255 = vsel %vm92, %v245, 0.0
    %v256 = vrot.slane %v255, 4
    %v257 = vadd.f32 %v255, %v256
    %v258 = vrot.slane %v257, 2
    %v259 = vadd.f32 %v257, %v258
    %v260 = vrot.slane %v259, 1
    %v261 = vadd.f32 %v259, %v260
    %v264 = vrot.slane %v261, 7
    %v265 = vsel %vm85, %v254, %v264
    %v267 = vsel %vm90, %v265, 0.0
    %v268 = vsel %vm88, 1, 0
    %v269 = vcvt.s32.f32 %v268
    %v270 = vsel %vm90, 1, 0
    %v271 = vcvt.s32.f32 %v270
    %v272 = vld [vmem:[#allocation7] ss:$4 sm:$0x3]
    %v273 = vadd.f32 %v272, %v221
    %v274 = vlaneseq
    %vm275 = vcmp.ge.s32.totalorder %v274, 0
    %vm276 = vcmp.lt.s32.totalorder %v274, 256
    %vm277 = vmand %vm275, %vm276
    %278 = vst.msk [vmem:[#allocation7] ss:$4 sm:$0x3] %vm277, %v273
    %s279 = scalar_lea.vmem [#allocation7], 1
    %v280 = vld [vmem:[%s279] ss:$4 sm:$0x3]
    %v281 = vadd.f32 %v280, %v269
    %282 = vst.msk [vmem:[%s279] ss:$4 sm:$0x3] %vm277, %v281
    %s283 = scalar_lea.vmem [#allocation7], 2
    %v284 = vld [vmem:[%s283] ss:$4 sm:$0x3]
    %v285 = vadd.f32 %v284, %v267
    %286 = vst.msk [vmem:[%s283] ss:$4 sm:$0x3] %vm277, %v285
    %s287 = scalar_lea.vmem [#allocation7], 3
    %v288 = vld [vmem:[%s287] ss:$4 sm:$0x3]
    %v289 = vadd.f32 %v288, %v271
    %290 = vst.msk [vmem:[%s287] ss:$4 sm:$0x3] %vm277, %v289
    // Predicated region
    $region22: #{tpu_custom_call.1} parent=1 // pred_check
      _
    $region23: #{tpu_custom_call.1} parent=1 // pred_check_branch
      %292 = sbr.rel (0) target = $region25
    $region24: #{tpu_custom_call.1} parent=1 // pred_region
      %294 = vsyncadd [#allocation4], 0
      %s296 = sshll.u32 [#allocation7], 4
      %s297 = int_to_ptr.vmem [resolvable:$true] %s296
      %s298 = sshll.u32 %s2, 4
      %s299 = int_to_ptr.hbm [resolvable:$true] %s298
      %301 = dma.vmem_to_hbm [thread:$0]  %s297, 128, %s299, [#allocation4]
    $region25: #{tpu_custom_call.1} parent=1 // pred_fallthru
      _
    // Predicated region
    $region26: #{tpu_custom_call.1} parent=1 // pred_check
      _
    $region27: #{tpu_custom_call.1} parent=1 // pred_check_branch
      %303 = sbr.rel (0) target = $region29
    $region28: #{tpu_custom_call.1} parent=1 // pred_region
      %305 = dma.done [#allocation4], 128
    $region29: #{tpu_custom_call.1} parent=1 // pred_fallthru
      _
    %306 = vsyncpa [#allocation3], 1
    %307 = vsyncpa [#allocation6], 1
    %308 = vsyncpa [#allocation4], 1

</llo_original>
